<compile_context>
chip_gen: v6e
topology: v6e:2x2x1
jax: 0.10.0
libtpu: 0.0.40
codegen_flags: <defaults>
</compile_context>

<pallas_src>
import functools

import jax
import jax.numpy as jnp
from jax.experimental import pallas as pl
from jax.experimental.pallas import tpu as pltpu


# ----------------------------------------------------------------------------
# Parameter prep (one-time): transpose + cast every weight, build head masks.
# ----------------------------------------------------------------------------
def prepare_params(params, num_heads, compute_dtype=jnp.float32):
    D = params["attn_out_w"].shape[0]
    P = params["img_w2"].shape[0]
    H = num_heads
    Dh = D // H
    cd = compute_dtype
    in_w = params["attn_in_w"]          # [3D, D]
    in_b = params["attn_in_b"]          # [3D]
    # hmask[d, h] = 1 iff embedding dim d belongs to head h (0/1 exact in any dtype).
    hmask = jnp.repeat(jnp.eye(H, dtype=cd), Dh, axis=0)         # [D, H]
    return {
        "wqT": in_w[:D].T.astype(cd),                            # [D, D]
        "wkvT": in_w[D:].T.astype(cd),                           # [D, 2D] (Wk|Wv fused)
        "bq": in_b[:D].reshape(1, D).astype(jnp.float32),
        "bkv": in_b[D:].reshape(1, 2 * D).astype(jnp.float32),
        "hmask": hmask,                                          # [D, H]
        "hmaskT": hmask.T,                                       # [H, D]
        "woT": params["attn_out_w"].T.astype(cd),                # [D, D]
        "bo": params["attn_out_b"].reshape(1, D).astype(jnp.float32),
        "img_w1T": params["img_w1"].T.astype(cd),                # [D, P]
        "img_b1": params["img_b1"].reshape(1, P).astype(jnp.float32),
        "img_w2T": params["img_w2"].T.astype(cd),                # [P, P]
        "img_b2": params["img_b2"].reshape(1, P).astype(jnp.float32),
        "txt_w1T": params["txt_w1"].T.astype(cd),                # [D, P]
        "txt_b1": params["txt_b1"].reshape(1, P).astype(jnp.float32),
        "txt_w2T": params["txt_w2"].T.astype(cd),                # [P, P]
        "txt_b2": params["txt_b2"].reshape(1, P).astype(jnp.float32),
        "num_heads": H,
        "embed_dim": D,
        "proj_dim": P,
        "scale": 1.0 / float(Dh ** 0.5),
        "compute_dtype": cd,
    }


def _pick_block_b(B, N, D, itemsize, max_bb=256, vmem_budget_bytes=32 * 1024 * 1024):
    """Largest batch block (divisor of B, <= max_bb) whose double-buffered patch
    input block plus f32 K/V and score/prob intermediates fit the VMEM budget.
    The 32 MiB default budget keeps double-buffering alive on v7x's 64 MiB VMEM;
    v5e/v6e (128 MiB) could raise it, but BB beyond ~128-256 buys nothing."""
    per_row = 2 * N * D * itemsize       # double-buffered patch input block
    per_row += N * 2 * D * 4             # f32 kv accumulation
    per_row += 2 * N * D * 4             # f32 kq / p_full intermediates
    bb = int(max(1, min(B, max_bb, vmem_budget_bytes // max(per_row, 1))))
    while B % bb:
        bb -= 1
    return bb


# ----------------------------------------------------------------------------
# Kernel 1: CLS-row cross-attention (all heads fused) + image ProjectionHead,
# batched over BB batch rows per grid step.  Weights use constant block indices
# so they stay resident in VMEM across the grid.
# ----------------------------------------------------------------------------
def _attn_img_proj_kernel(cls_ref, patch_ref,
                          wqT_ref, wkvT_ref, bq_ref, bkv_ref,
                          hmask_ref, hmaskT_ref,
                          woT_ref, bo_ref,
                          w1T_ref, b1_ref, w2T_ref, b2_ref,
                          out_ref, *, scale, normalize):
    D = wqT_ref.shape[0]
    H = hmask_ref.shape[1]
    BB, N, _ = patch_ref.shape
    mm_dtype = hmask_ref.dtype           # compute dtype for MXU operands

    cls = cls_ref[...]                   # [BB, D]  CLS text tokens (compute dtype)
    patch = patch_ref[...]               # [BB, N, D] image patch tokens

    # Q for the whole batch block (f32 accumulation on the MXU).
    q = jnp.dot(cls, wqT_ref[...], preferred_element_type=jnp.float32) + bq_ref[...]   # [BB, D]

    # K/V: one tall [BB*N, D] x [D, 2D] MXU contraction (Wk|Wv fused).
    # (N a multiple of 8 keeps the merge/split reshapes free retilings.)
    kv = jnp.dot(patch.reshape(BB * N, D), wkvT_ref[...],
                 preferred_element_type=jnp.float32) + bkv_ref[...]                    # [BB*N, 2D]
    k = kv[:, :D]
    v = kv[:, D:]

    # Per-head scores s[b, n, h] = sum_{d in head h} q[b, d] * k[b, n, d]:
    # broadcast q over patches (VPU), pool head dims via the [D, H] mask matmul.
    kq = k.reshape(BB, N, D) * q[:, None, :]                                            # [BB, N, D]
    s = jnp.dot(kq.reshape(BB * N, D).astype(mm_dtype), hmask_ref[...],
                preferred_element_type=jnp.float32).reshape(BB, N, H) * scale           # [BB, N, H]

    # Row-wise softmax over the patch axis (per batch row, per head), f32 math.
    s = s - jnp.max(s, axis=1, keepdims=True)
    p = jnp.exp(s)
    p = p * pl.reciprocal(jnp.sum(p, axis=1, keepdims=True), approx=True)               # [BB, N, H]

    # Broadcast head probabilities back onto embedding lanes, reduce over patches.
    # The VPU reduce (~2*BB*N*D/1024 vector ops) hides under the kv MXU matmul.
    p_full = jnp.dot(p.reshape(BB * N, H).astype(mm_dtype), hmaskT_ref[...],
                     preferred_element_type=jnp.float32)                                # [BB*N, D]
    ctx = jnp.sum((p_full * v).reshape(BB, N, D), axis=1)                               # [BB, D]

    attn = jnp.dot(ctx.astype(woT_ref.dtype), woT_ref[...],
                   preferred_element_type=jnp.float32) + bo_ref[...]                    # [BB, D]

    # Fused image ProjectionHead: Linear -> ReLU -> Linear -> F.normalize.
    h = jnp.dot(attn.astype(w1T_ref.dtype), w1T_ref[...],
                preferred_element_type=jnp.float32) + b1_ref[...]
    h = jnp.maximum(h, 0.0)
    y = jnp.dot(h.astype(w2T_ref.dtype), w2T_ref[...],
                preferred_element_type=jnp.float32) + b2_ref[...]
    if normalize:
        # y / max(||y||, 1e-12) == y * rsqrt(max(||y||^2, 1e-24))
        y = y * jax.lax.rsqrt(jnp.maximum(jnp.sum(y * y, axis=-1, keepdims=True), 1e-24))
    out_ref[...] = y.astype(out_ref.dtype)


def cross_attention_image_emb(patch_feats, text_feats, prep, normalize=True, block_b=None):
    """softmax(q_cls K^T / sqrt(Dh)) V per head -> out-proj -> image proj head."""
    B, N, D = patch_feats.shape
    P = prep["proj_dim"]
    H = prep["num_heads"]
    cd = prep["compute_dtype"]

    cls = text_feats[:, 0, :].astype(cd)            # [B, D] CLS query rows (2-D)
    patch = patch_feats.astype(cd)                  # [B, N, D]

    BB = block_b if block_b is not None else _pick_block_b(B, N, D, jnp.dtype(cd).itemsize)
    assert B % BB == 0, f"batch block {BB} must divide batch {B}"

    def const(shape):
        return pl.BlockSpec(shape, lambda i: (0,) * len(shape))

    out = pl.pallas_call(
        functools.partial(_attn_img_proj_kernel, scale=prep["scale"], normalize=normalize),
        out_shape=jax.ShapeDtypeStruct((B, P), jnp.float32),
        grid=(B // BB,),
        in_specs=[
            pl.BlockSpec((BB, D), lambda i: (i, 0)),        # CLS query rows
            pl.BlockSpec((BB, N, D), lambda i: (i, 0, 0)),  # patch tokens
            const((D, D)),        # Wq^T
            const((D, 2 * D)),    # [Wk|Wv]^T
            const((1, D)),        # bq
            const((1, 2 * D)),    # [bk|bv]
            const((D, H)),        # head-pool mask
            const((H, D)),        # head-broadcast mask
            const((D, D)),        # Wo^T
            const((1, D)),        # bo
            const((D, P)),        # img proj W1^T
            const((1, P)),        # img proj b1
            const((P, P)),        # img proj W2^T
            const((1, P)),        # img proj b2
        ],
        out_specs=pl.BlockSpec((BB, P), lambda i: (i, 0)),
        compiler_params=pltpu.CompilerParams(dimension_semantics=("parallel",)),
    )(cls, patch,
      prep["wqT"], prep["wkvT"], prep["bq"], prep["bkv"],
      prep["hmask"], prep["hmaskT"],
      prep["woT"], prep["bo"],
      prep["img_w1T"], prep["img_b1"], prep["img_w2T"], prep["img_b2"])
    return out                                        # [B, P]


# ----------------------------------------------------------------------------
# Kernel 2: text ProjectionHead on the stacked pos/neg CLS tokens ([2B, D]),
# row-tiled parallel grid so it pipelines / shards across TensorCores.
# ----------------------------------------------------------------------------
def _proj_head_kernel(x_ref, w1T_ref, b1_ref, w2T_ref, b2_ref, out_ref, *, normalize):
    h = jnp.dot(x_ref[...], w1T_ref[...], preferred_element_type=jnp.float32) + b1_ref[...]
    h = jnp.maximum(h, 0.0)
    y = jnp.dot(h.astype(w2T_ref.dtype), w2T_ref[...],
                preferred_element_type=jnp.float32) + b2_ref[...]
    if normalize:
        y = y * jax.lax.rsqrt(jnp.maximum(jnp.sum(y * y, axis=-1, keepdims=True), 1e-24))
    out_ref[...] = y.astype(out_ref.dtype)


def text_projection(x, prep, normalize=True, block_rows=256):
    B2, D = x.shape
    P = prep["proj_dim"]
    cd = prep["compute_dtype"]

    TB = min(B2, block_rows)
    while B2 % TB:
        TB -= 1

    return pl.pallas_call(
        functools.partial(_proj_head_kernel, normalize=normalize),
        out_shape=jax.ShapeDtypeStruct((B2, P), jnp.float32),
        grid=(B2 // TB,),
        in_specs=[
            pl.BlockSpec((TB, D), lambda i: (i, 0)),
            pl.BlockSpec((D, P), lambda i: (0, 0)),
            pl.BlockSpec((1, P), lambda i: (0, 0)),
            pl.BlockSpec((P, P), lambda i: (0, 0)),
            pl.BlockSpec((1, P), lambda i: (0, 0)),
        ],
        out_specs=pl.BlockSpec((TB, P), lambda i: (i, 0)),
        compiler_params=pltpu.CompilerParams(dimension_semantics=("parallel",)),
    )(x.astype(cd), prep["txt_w1T"], prep["txt_b1"], prep["txt_w2T"], prep["txt_b2"])


# ----------------------------------------------------------------------------
# OOCBasic forward (post-encoder portion)
# ----------------------------------------------------------------------------
def ooc_basic_forward(patch_feats, pos_txt_tokens, neg_txt_tokens, prep,
                      normalize_toks=True, block_b=None):
    # NOTE: the PyTorch reference also computes neg_context = cross_attn(patch, neg)
    # but never uses it; that dead pass is dropped here (outputs are identical).
    img_emb = cross_attention_image_emb(patch_feats, pos_txt_tokens, prep,
                                        normalize=normalize_toks, block_b=block_b)   # [B, P]
    B = pos_txt_tokens.shape[0]
    cls_stack = jnp.concatenate(
        [pos_txt_tokens[:, 0, :], neg_txt_tokens[:, 0, :]], axis=0)                  # [2B, D]
    txt_emb = text_projection(cls_stack, prep, normalize=normalize_toks)             # [2B, P]
    return img_emb, txt_emb[:B], txt_emb[B:]


# ----------------------------------------------------------------------------
# Pure-JAX reference for validation
# ----------------------------------------------------------------------------
def _mha_ref(text, patch, params, H):
    B, T, D = text.shape
    Dh = D // H
    wq, wk, wv = jnp.split(params["attn_in_w"], 3, axis=0)
    bq, bk, bv = jnp.split(params["attn_in_b"], 3, axis=0)
    q = text @ wq.T + bq
    k = patch @ wk.T + bk
    v = patch @ wv.T + bv

    def split(x):
        b, s, _ = x.shape
        return x.reshape(b, s, H, Dh).transpose(0, 2, 1, 3)

    qh, kh, vh = split(q), split(k), split(v)
    s = jnp.einsum("bhtd,bhnd->bhtn", qh, kh) / (Dh ** 0.5)
    p = jax.nn.softmax(s, axis=-1)
    ctx = jnp.einsum("bhtn,bhnd->bhtd", p, vh).transpose(0, 2, 1, 3).reshape(B, T, D)
    out = ctx @ params["attn_out_w"].T + params["attn_out_b"]
    return out[:, 0, :]


def _proj_ref(x, w1, b1, w2, b2):
    h = jnp.maximum(x @ w1.T + b1, 0.0)
    y = h @ w2.T + b2
    return y / jnp.maximum(jnp.linalg.norm(y, axis=-1, keepdims=True), 1e-12)


def _forward_ref(patch, pos, neg, params, H):
    pc = _mha_ref(pos, patch, params, H)
    img = _proj_ref(pc, params["img_w1"], params["img_b1"],
                    params["img_w2"], params["img_b2"])
    pe = _proj_ref(pos[:, 0], params["txt_w1"], params["txt_b1"],
                   params["txt_w2"], params["txt_b2"])
    ne = _proj_ref(neg[:, 0], params["txt_w1"], params["txt_b1"],
                   params["txt_w2"], params["txt_b2"])
    return img, pe, ne


if __name__ == "__main__":
    # Small, self-consistent shapes: embed_dim=32, proj_dim=32, heads=4.
    B, N, T, D, H, P = 4, 8, 8, 32, 4, 32

    key = jax.random.PRNGKey(0)
    keys = jax.random.split(key, 16)

    # Synthetic encoder outputs (see TODO(synk) above).
    patch_feats = jax.random.normal(keys[0], (B, N, D), jnp.float32)
    pos_txt_tokens = jax.random.normal(keys[1], (B, T, D), jnp.float32)
    neg_txt_tokens = jax.random.normal(keys[2], (B, T, D), jnp.float32)

    s = 0.05
    params = {
        # nn.MultiheadAttention parameters
        "attn_in_w": s * jax.random.normal(keys[3], (3 * D, D), jnp.float32),
        "attn_in_b": s * jax.random.normal(keys[4], (3 * D,), jnp.float32),
        "attn_out_w": s * jax.random.normal(keys[5], (D, D), jnp.float32),
        "attn_out_b": s * jax.random.normal(keys[6], (D,), jnp.float32),
        # image ProjectionHead
        "img_w1": s * jax.random.normal(keys[7], (P, D), jnp.float32),
        "img_b1": s * jax.random.normal(keys[8], (P,), jnp.float32),
        "img_w2": s * jax.random.normal(keys[9], (P, P), jnp.float32),
        "img_b2": s * jax.random.normal(keys[10], (P,), jnp.float32),
        # text ProjectionHead
        "txt_w1": s * jax.random.normal(keys[11], (P, D), jnp.float32),
        "txt_b1": s * jax.random.normal(keys[12], (P,), jnp.float32),
        "txt_w2": s * jax.random.normal(keys[13], (P, P), jnp.float32),
        "txt_b2": s * jax.random.normal(keys[14], (P,), jnp.float32),
    }

    ref = _forward_ref(patch_feats, pos_txt_tokens, neg_txt_tokens, params, H)

    # (a) f32 compute dtype, auto batch block (BB == B here): strict validation
    #     (tolerance allows the approximate EUP reciprocal in the softmax).
    prep_f32 = prepare_params(params, num_heads=H, compute_dtype=jnp.float32)
    out_f32 = ooc_basic_forward(patch_feats, pos_txt_tokens, neg_txt_tokens, prep_f32)
    jax.block_until_ready(out_f32)
    for got, want in zip(out_f32, ref):
        assert got.shape == want.shape
        assert bool(jnp.allclose(got, want, atol=5e-3, rtol=5e-3)), "f32 mismatch vs reference"

    # (b) forced multi-step batch-blocked grid (BB=2 -> grid=(2,)): exercises the
    #     batched index maps / block writeback.
    out_blk = ooc_basic_forward(patch_feats, pos_txt_tokens, neg_txt_tokens,
                                prep_f32, block_b=2)
    jax.block_until_ready(out_blk)
    for got, want in zip(out_blk, ref):
        assert got.shape == want.shape
        assert bool(jnp.allclose(got, want, atol=5e-3, rtol=5e-3)), "blocked-grid mismatch"

    # (c) bf16 MXU operands / f32 accumulation: the v6e/v7x-friendly config.
    prep_bf16 = prepare_params(params, num_heads=H, compute_dtype=jnp.bfloat16)
    out_bf16 = ooc_basic_forward(patch_feats, pos_txt_tokens, neg_txt_tokens, prep_bf16)
    jax.block_until_ready(out_bf16)
    for got, want in zip(out_bf16, ref):
        assert got.shape == want.shape
        assert bool(jnp.allclose(got, want, atol=2e-2, rtol=2e-2)), "bf16 mismatch vs reference"

    print("KERNEL_OK")
</pallas_src>

<mosaic_0001>
module attributes {stable_mosaic.version = 11 : i64} {
  func.func @_attn_img_proj_kernel(%arg0: i32, %arg1: memref<4x32xf32, #tpu.memory_space<vmem>>, %arg2: memref<4x8x32xf32, #tpu.memory_space<vmem>>, %arg3: memref<32x32xf32, #tpu.memory_space<vmem>>, %arg4: memref<32x64xf32, #tpu.memory_space<vmem>>, %arg5: memref<1x32xf32, #tpu.memory_space<vmem>>, %arg6: memref<1x64xf32, #tpu.memory_space<vmem>>, %arg7: memref<32x4xf32, #tpu.memory_space<vmem>>, %arg8: memref<4x32xf32, #tpu.memory_space<vmem>>, %arg9: memref<32x32xf32, #tpu.memory_space<vmem>>, %arg10: memref<1x32xf32, #tpu.memory_space<vmem>>, %arg11: memref<32x32xf32, #tpu.memory_space<vmem>>, %arg12: memref<1x32xf32, #tpu.memory_space<vmem>>, %arg13: memref<32x32xf32, #tpu.memory_space<vmem>>, %arg14: memref<1x32xf32, #tpu.memory_space<vmem>>, %arg15: memref<4x32xf32, #tpu.memory_space<vmem>>) attributes {dimension_semantics = [#tpu.dimension_semantics<parallel>], iteration_bounds = array<i64: 1>, scalar_prefetch = 0 : i64, scratch_operands = 0 : i64, tpu.core_type = #tpu.core_type<tc>, window_params = [{transform_indices = @transform_0, window_bounds = array<i64: 4, 32>}, {transform_indices = @transform_1, window_bounds = array<i64: 4, 8, 32>}, {pipeline_mode = #tpu.pipeline_mode<synchronous>, transform_indices = @transform_2, window_bounds = array<i64: 32, 32>}, {pipeline_mode = #tpu.pipeline_mode<synchronous>, transform_indices = @transform_3, window_bounds = array<i64: 32, 64>}, {pipeline_mode = #tpu.pipeline_mode<synchronous>, transform_indices = @transform_4, window_bounds = array<i64: 1, 32>}, {pipeline_mode = #tpu.pipeline_mode<synchronous>, transform_indices = @transform_5, window_bounds = array<i64: 1, 64>}, {pipeline_mode = #tpu.pipeline_mode<synchronous>, transform_indices = @transform_6, window_bounds = array<i64: 32, 4>}, {pipeline_mode = #tpu.pipeline_mode<synchronous>, transform_indices = @transform_7, window_bounds = array<i64: 4, 32>}, {pipeline_mode = #tpu.pipeline_mode<synchronous>, transform_indices = @transform_8, window_bounds = array<i64: 32, 32>}, {pipeline_mode = #tpu.pipeline_mode<synchronous>, transform_indices = @transform_9, window_bounds = array<i64: 1, 32>}, {pipeline_mode = #tpu.pipeline_mode<synchronous>, transform_indices = @transform_10, window_bounds = array<i64: 32, 32>}, {pipeline_mode = #tpu.pipeline_mode<synchronous>, transform_indices = @transform_11, window_bounds = array<i64: 1, 32>}, {pipeline_mode = #tpu.pipeline_mode<synchronous>, transform_indices = @transform_12, window_bounds = array<i64: 32, 32>}, {pipeline_mode = #tpu.pipeline_mode<synchronous>, transform_indices = @transform_13, window_bounds = array<i64: 1, 32>}, {transform_indices = @transform_14, window_bounds = array<i64: 4, 32>}]} {
    %c0 = arith.constant 0 : index
    %c0_0 = arith.constant 0 : index
    %0 = vector.load %arg1[%c0, %c0_0] : memref<4x32xf32, #tpu.memory_space<vmem>>, vector<4x32xf32>
    %c0_1 = arith.constant 0 : index
    %c0_2 = arith.constant 0 : index
    %c0_3 = arith.constant 0 : index
    %1 = vector.load %arg2[%c0_1, %c0_2, %c0_3] : memref<4x8x32xf32, #tpu.memory_space<vmem>>, vector<4x8x32xf32>
    %c0_4 = arith.constant 0 : index
    %c0_5 = arith.constant 0 : index
    %2 = vector.load %arg3[%c0_4, %c0_5] : memref<32x32xf32, #tpu.memory_space<vmem>>, vector<32x32xf32>
    %cst = arith.constant dense<0.000000e+00> : vector<4x32xf32>
    %3 = tpu.matmul %0, %2, %cst {dimension_numbers = #tpu.dot_dimension_numbers<[1], [0], [0], [1], [0, 0, 1, 1], [], []>} : vector<4x32xf32>, vector<32x32xf32>, vector<4x32xf32> -> vector<4x32xf32>
    %c0_6 = arith.constant 0 : index
    %c0_7 = arith.constant 0 : index
    %4 = vector.load %arg5[%c0_6, %c0_7] : memref<1x32xf32, #tpu.memory_space<vmem>>, vector<1x32xf32>
    %5 = vector.broadcast %4 : vector<1x32xf32> to vector<4x32xf32>
    %6 = arith.addf %3, %5 : vector<4x32xf32>
    %7 = vector.shape_cast %1 : vector<4x8x32xf32> to vector<32x32xf32>
    %c0_8 = arith.constant 0 : index
    %c0_9 = arith.constant 0 : index
    %8 = vector.load %arg4[%c0_8, %c0_9] : memref<32x64xf32, #tpu.memory_space<vmem>>, vector<32x64xf32>
    %cst_10 = arith.constant dense<0.000000e+00> : vector<32x64xf32>
    %9 = tpu.matmul %7, %8, %cst_10 {dimension_numbers = #tpu.dot_dimension_numbers<[1], [0], [0], [1], [0, 0, 1, 1], [], []>} : vector<32x32xf32>, vector<32x64xf32>, vector<32x64xf32> -> vector<32x64xf32>
    %c0_11 = arith.constant 0 : index
    %c0_12 = arith.constant 0 : index
    %10 = vector.load %arg6[%c0_11, %c0_12] : memref<1x64xf32, #tpu.memory_space<vmem>>, vector<1x64xf32>
    %11 = vector.broadcast %10 : vector<1x64xf32> to vector<32x64xf32>
    %12 = arith.addf %9, %11 : vector<32x64xf32>
    %13 = vector.extract_strided_slice %12 {offsets = [0, 0], sizes = [32, 32], strides = [1, 1]} : vector<32x64xf32> to vector<32x32xf32>
    %14 = vector.extract_strided_slice %12 {offsets = [0, 32], sizes = [32, 32], strides = [1, 1]} : vector<32x64xf32> to vector<32x32xf32>
    %15 = vector.shape_cast %13 : vector<32x32xf32> to vector<4x8x32xf32>
    %16 = vector.shape_cast %6 : vector<4x32xf32> to vector<4x1x32xf32>
    %17 = vector.broadcast %16 : vector<4x1x32xf32> to vector<4x8x32xf32>
    %18 = arith.mulf %15, %17 : vector<4x8x32xf32>
    %19 = vector.shape_cast %18 : vector<4x8x32xf32> to vector<32x32xf32>
    %c0_13 = arith.constant 0 : index
    %c0_14 = arith.constant 0 : index
    %20 = vector.load %arg7[%c0_13, %c0_14] : memref<32x4xf32, #tpu.memory_space<vmem>>, vector<32x4xf32>
    %cst_15 = arith.constant dense<0.000000e+00> : vector<32x4xf32>
    %21 = tpu.matmul %19, %20, %cst_15 {dimension_numbers = #tpu.dot_dimension_numbers<[1], [0], [0], [1], [0, 0, 1, 1], [], []>} : vector<32x32xf32>, vector<32x4xf32>, vector<32x4xf32> -> vector<32x4xf32>
    %22 = vector.shape_cast %21 : vector<32x4xf32> to vector<4x8x4xf32>
    %cst_16 = arith.constant 0.353553385 : f32
    %23 = vector.broadcast %cst_16 : f32 to vector<4x8x4xf32>
    %24 = arith.mulf %22, %23 : vector<4x8x4xf32>
    %cst_17 = arith.constant dense<0xFF800000> : vector<4x4xf32>
    %25 = vector.multi_reduction <maximumf>, %24, %cst_17 [1] : vector<4x8x4xf32> to vector<4x4xf32>
    %26 = vector.shape_cast %25 : vector<4x4xf32> to vector<4x1x4xf32>
    %27 = vector.broadcast %26 : vector<4x1x4xf32> to vector<4x8x4xf32>
    %28 = arith.subf %24, %27 : vector<4x8x4xf32>
    %29 = math.exp %28 : vector<4x8x4xf32>
    %cst_18 = arith.constant dense<0.000000e+00> : vector<4x4xf32>
    %30 = vector.multi_reduction <add>, %29, %cst_18 [1] : vector<4x8x4xf32> to vector<4x4xf32>
    %31 = vector.shape_cast %30 : vector<4x4xf32> to vector<4x1x4xf32>
    %32 = tpu.reciprocal %31 {approx = true} : vector<4x1x4xf32> -> vector<4x1x4xf32>
    %33 = vector.broadcast %32 : vector<4x1x4xf32> to vector<4x8x4xf32>
    %34 = arith.mulf %29, %33 : vector<4x8x4xf32>
    %35 = vector.shape_cast %34 : vector<4x8x4xf32> to vector<32x4xf32>
    %c0_19 = arith.constant 0 : index
    %c0_20 = arith.constant 0 : index
    %36 = vector.load %arg8[%c0_19, %c0_20] : memref<4x32xf32, #tpu.memory_space<vmem>>, vector<4x32xf32>
    %cst_21 = arith.constant dense<0.000000e+00> : vector<32x32xf32>
    %37 = tpu.matmul %35, %36, %cst_21 {dimension_numbers = #tpu.dot_dimension_numbers<[1], [0], [0], [1], [0, 0, 1, 1], [], []>} : vector<32x4xf32>, vector<4x32xf32>, vector<32x32xf32> -> vector<32x32xf32>
    %38 = arith.mulf %37, %14 : vector<32x32xf32>
    %39 = vector.shape_cast %38 : vector<32x32xf32> to vector<4x8x32xf32>
    %cst_22 = arith.constant dense<0.000000e+00> : vector<4x32xf32>
    %40 = vector.multi_reduction <add>, %39, %cst_22 [1] : vector<4x8x32xf32> to vector<4x32xf32>
    %c0_23 = arith.constant 0 : index
    %c0_24 = arith.constant 0 : index
    %41 = vector.load %arg9[%c0_23, %c0_24] : memref<32x32xf32, #tpu.memory_space<vmem>>, vector<32x32xf32>
    %cst_25 = arith.constant dense<0.000000e+00> : vector<4x32xf32>
    %42 = tpu.matmul %40, %41, %cst_25 {dimension_numbers = #tpu.dot_dimension_numbers<[1], [0], [0], [1], [0, 0, 1, 1], [], []>} : vector<4x32xf32>, vector<32x32xf32>, vector<4x32xf32> -> vector<4x32xf32>
    %c0_26 = arith.constant 0 : index
    %c0_27 = arith.constant 0 : index
    %43 = vector.load %arg10[%c0_26, %c0_27] : memref<1x32xf32, #tpu.memory_space<vmem>>, vector<1x32xf32>
    %44 = vector.broadcast %43 : vector<1x32xf32> to vector<4x32xf32>
    %45 = arith.addf %42, %44 : vector<4x32xf32>
    %c0_28 = arith.constant 0 : index
    %c0_29 = arith.constant 0 : index
    %46 = vector.load %arg11[%c0_28, %c0_29] : memref<32x32xf32, #tpu.memory_space<vmem>>, vector<32x32xf32>
    %cst_30 = arith.constant dense<0.000000e+00> : vector<4x32xf32>
    %47 = tpu.matmul %45, %46, %cst_30 {dimension_numbers = #tpu.dot_dimension_numbers<[1], [0], [0], [1], [0, 0, 1, 1], [], []>} : vector<4x32xf32>, vector<32x32xf32>, vector<4x32xf32> -> vector<4x32xf32>
    %c0_31 = arith.constant 0 : index
    %c0_32 = arith.constant 0 : index
    %48 = vector.load %arg12[%c0_31, %c0_32] : memref<1x32xf32, #tpu.memory_space<vmem>>, vector<1x32xf32>
    %49 = vector.broadcast %48 : vector<1x32xf32> to vector<4x32xf32>
    %50 = arith.addf %47, %49 : vector<4x32xf32>
    %cst_33 = arith.constant 0.000000e+00 : f32
    %51 = vector.broadcast %cst_33 : f32 to vector<4x32xf32>
    %52 = arith.maximumf %50, %51 : vector<4x32xf32>
    %c0_34 = arith.constant 0 : index
    %c0_35 = arith.constant 0 : index
    %53 = vector.load %arg13[%c0_34, %c0_35] : memref<32x32xf32, #tpu.memory_space<vmem>>, vector<32x32xf32>
    %cst_36 = arith.constant dense<0.000000e+00> : vector<4x32xf32>
    %54 = tpu.matmul %52, %53, %cst_36 {dimension_numbers = #tpu.dot_dimension_numbers<[1], [0], [0], [1], [0, 0, 1, 1], [], []>} : vector<4x32xf32>, vector<32x32xf32>, vector<4x32xf32> -> vector<4x32xf32>
    %c0_37 = arith.constant 0 : index
    %c0_38 = arith.constant 0 : index
    %55 = vector.load %arg14[%c0_37, %c0_38] : memref<1x32xf32, #tpu.memory_space<vmem>>, vector<1x32xf32>
    %56 = vector.broadcast %55 : vector<1x32xf32> to vector<4x32xf32>
    %57 = arith.addf %54, %56 : vector<4x32xf32>
    %58 = arith.mulf %57, %57 : vector<4x32xf32>
    %cst_39 = arith.constant dense<0.000000e+00> : vector<4xf32>
    %59 = vector.multi_reduction <add>, %58, %cst_39 [1] : vector<4x32xf32> to vector<4xf32>
    %60 = vector.shape_cast %59 : vector<4xf32> to vector<4x1xf32>
    %cst_40 = arith.constant 1.000000e-24 : f32
    %61 = vector.broadcast %cst_40 : f32 to vector<4x1xf32>
    %62 = arith.maximumf %60, %61 : vector<4x1xf32>
    %63 = math.rsqrt %62 : vector<4x1xf32>
    %64 = vector.broadcast %63 : vector<4x1xf32> to vector<4x32xf32>
    %65 = arith.mulf %57, %64 : vector<4x32xf32>
    %c0_41 = arith.constant 0 : index
    %c0_42 = arith.constant 0 : index
    %66 = vector.load %arg15[%c0_41, %c0_42] : memref<4x32xf32, #tpu.memory_space<vmem>>, vector<4x32xf32>
    tpu.vector_store %arg15[%c0_41, %c0_42], %65 {strides = array<i32>} : memref<4x32xf32, #tpu.memory_space<vmem>>, vector<4x32xf32>,
    return
  }
  func.func @transform_0(%arg0: i32) -> (i32, i32) {
    %c0_i32 = arith.constant 0 : i32
    %c0_i32_0 = arith.constant 0 : i32
    return %arg0, %c0_i32 : i32, i32
  }
  func.func @transform_1(%arg0: i32) -> (i32, i32, i32) {
    %c0_i32 = arith.constant 0 : i32
    %c0_i32_0 = arith.constant 0 : i32
    %c0_i32_1 = arith.constant 0 : i32
    return %arg0, %c0_i32, %c0_i32_0 : i32, i32, i32
  }
  func.func @transform_2(%arg0: i32) -> (i32, i32) {
    %c0_i32 = arith.constant 0 : i32
    %c0_i32_0 = arith.constant 0 : i32
    %c0_i32_1 = arith.constant 0 : i32
    return %c0_i32, %c0_i32_0 : i32, i32
  }
  func.func @transform_3(%arg0: i32) -> (i32, i32) {
    %c0_i32 = arith.constant 0 : i32
    %c0_i32_0 = arith.constant 0 : i32
    %c0_i32_1 = arith.constant 0 : i32
    return %c0_i32, %c0_i32_0 : i32, i32
  }
  func.func @transform_4(%arg0: i32) -> (i32, i32) {
    %c0_i32 = arith.constant 0 : i32
    %c0_i32_0 = arith.constant 0 : i32
    %c0_i32_1 = arith.constant 0 : i32
    return %c0_i32, %c0_i32_0 : i32, i32
  }
  func.func @transform_5(%arg0: i32) -> (i32, i32) {
    %c0_i32 = arith.constant 0 : i32
    %c0_i32_0 = arith.constant 0 : i32
    %c0_i32_1 = arith.constant 0 : i32
    return %c0_i32, %c0_i32_0 : i32, i32
  }
  func.func @transform_6(%arg0: i32) -> (i32, i32) {
    %c0_i32 = arith.constant 0 : i32
    %c0_i32_0 = arith.constant 0 : i32
    %c0_i32_1 = arith.constant 0 : i32
    return %c0_i32, %c0_i32_0 : i32, i32
  }
  func.func @transform_7(%arg0: i32) -> (i32, i32) {
    %c0_i32 = arith.constant 0 : i32
    %c0_i32_0 = arith.constant 0 : i32
    %c0_i32_1 = arith.constant 0 : i32
    return %c0_i32, %c0_i32_0 : i32, i32
  }
  func.func @transform_8(%arg0: i32) -> (i32, i32) {
    %c0_i32 = arith.constant 0 : i32
    %c0_i32_0 = arith.constant 0 : i32
    %c0_i32_1 = arith.constant 0 : i32
    return %c0_i32, %c0_i32_0 : i32, i32
  }
  func.func @transform_9(%arg0: i32) -> (i32, i32) {
    %c0_i32 = arith.constant 0 : i32
    %c0_i32_0 = arith.constant 0 : i32
    %c0_i32_1 = arith.constant 0 : i32
    return %c0_i32, %c0_i32_0 : i32, i32
  }
  func.func @transform_10(%arg0: i32) -> (i32, i32) {
    %c0_i32 = arith.constant 0 : i32
    %c0_i32_0 = arith.constant 0 : i32
    %c0_i32_1 = arith.constant 0 : i32
    return %c0_i32, %c0_i32_0 : i32, i32
  }
  func.func @transform_11(%arg0: i32) -> (i32, i32) {
    %c0_i32 = arith.constant 0 : i32
    %c0_i32_0 = arith.constant 0 : i32
    %c0_i32_1 = arith.constant 0 : i32
    return %c0_i32, %c0_i32_0 : i32, i32
  }
  func.func @transform_12(%arg0: i32) -> (i32, i32) {
    %c0_i32 = arith.constant 0 : i32
    %c0_i32_0 = arith.constant 0 : i32
    %c0_i32_1 = arith.constant 0 : i32
    return %c0_i32, %c0_i32_0 : i32, i32
  }
  func.func @transform_13(%arg0: i32) -> (i32, i32) {
    %c0_i32 = arith.constant 0 : i32
    %c0_i32_0 = arith.constant 0 : i32
    %c0_i32_1 = arith.constant 0 : i32
    return %c0_i32, %c0_i32_0 : i32, i32
  }
  func.func @transform_14(%arg0: i32) -> (i32, i32) {
    %c0_i32 = arith.constant 0 : i32
    %c0_i32_0 = arith.constant 0 : i32
    return %arg0, %c0_i32 : i32, i32
  }
}

</mosaic_0001>

<llo_original>
// kernel: tpu_custom_call.1
$region0: #{tpu_custom_call.1}
  #allocation0 [shape = 'u32[]', space=smem, size = 0x4, offset = 0x4, fixed_abs, tag = 'smem constant byte address 0x4 - core index']
  #allocation1 [shape = 'u32[144,128]{1,0:T(1,128)}', space=vmem, size = 0x12000, scoped, tag = 'internal scratch']
  %s0 = inlined_call_operand.vmem [shape: f32[4,32], index: 0, kind: input, shape index: {}]
  %s1 = inlined_call_operand.vmem [shape: f32[4,8,32], index: 1, kind: input, shape index: {}]
  %s2 = inlined_call_operand.hbm [shape: f32[32,32], index: 2, kind: input, shape index: {}]
  %s3 = inlined_call_operand.hbm [shape: f32[32,64], index: 3, kind: input, shape index: {}]
  %s4 = inlined_call_operand.vmem [shape: f32[1,32], index: 4, kind: input, shape index: {}]
  %s5 = inlined_call_operand.hbm [shape: f32[1,64], index: 5, kind: input, shape index: {}]
  %s6 = inlined_call_operand.vmem [shape: f32[32,4], index: 6, kind: input, shape index: {}]
  %s7 = inlined_call_operand.vmem [shape: f32[4,32], index: 7, kind: input, shape index: {}]
  %s8 = inlined_call_operand.hbm [shape: f32[32,32], index: 8, kind: input, shape index: {}]
  %s9 = inlined_call_operand.vmem [shape: f32[1,32], index: 9, kind: input, shape index: {}]
  %s10 = inlined_call_operand.hbm [shape: f32[32,32], index: 10, kind: input, shape index: {}]
  %s11 = inlined_call_operand.vmem [shape: f32[1,32], index: 11, kind: input, shape index: {}]
  %s12 = inlined_call_operand.hbm [shape: f32[32,32], index: 12, kind: input, shape index: {}]
  %s13 = inlined_call_operand.vmem [shape: f32[1,32], index: 13, kind: input, shape index: {}]
  %s14 = inlined_call_operand.hbm [shape: f32[4,32], index: 14, kind: output, shape index: {}]
  %s15 = sld [smem:[#allocation0]]
  $region90: #{tpu_custom_call.1} parent=0
    _
  %s17 = ssub.s32 1, %s15
  %s18 = scalar_select 0, %s17, %s15
  $region1: #{tpu_custom_call.1} parent=0
    #allocation2 [shape = 'u8[16384]{0}', space=vmem, size = 0x4000, scoped, tag = 'input window, operand 2, single buffered']
    #allocation3 [shape = 's32[1]{0}', space=sflag, size = 0x4, scoped, tag = 'scoped memory for tpu_custom_call.1']
    #allocation4 [shape = 's32[1]{0}', space=sflag, size = 0x4, scoped, tag = 'scoped memory for tpu_custom_call.1']
    #allocation5 [shape = 'u8[16384]{0}', space=vmem, size = 0x4000, scoped, tag = 'input window, operand 3, single buffered']
    #allocation6 [shape = 's32[1]{0}', space=sflag, size = 0x4, scoped, tag = 'scoped memory for tpu_custom_call.1']
    #allocation7 [shape = 'u8[512]{0}', space=vmem, size = 0x400, scoped, tag = 'input window, operand 5, single buffered']
    #allocation8 [shape = 'u8[16384]{0}', space=vmem, size = 0x4000, scoped, tag = 'input window, operand 8, single buffered']
    #allocation9 [shape = 's32[1]{0}', space=sflag, size = 0x4, scoped, tag = 'scoped memory for tpu_custom_call.1']
    #allocation10 [shape = 'u8[16384]{0}', space=vmem, size = 0x4000, scoped, tag = 'input window, operand 10, single buffered']
    #allocation11 [shape = 'u8[16384]{0}', space=vmem, size = 0x4000, scoped, tag = 'input window, operand 12, single buffered']
    #allocation12 [shape = 's32[1]{0}', space=sflag, size = 0x4, scoped, tag = 'scoped memory for tpu_custom_call.1']
    #allocation13 [shape = 'u8[2048]{0}', space=vmem, size = 0x800, scoped, tag = 'output window, operand 0, single buffered']
    %19 = vsyncpa [#allocation3], 0
    %20 = vsyncpa [#allocation6], 0
    %21 = vsyncpa [#allocation9], 0
    %22 = vsyncpa [#allocation12], 0
    %23 = vsyncpa [#allocation4], 0
    // Predicated region
    $region2: #{tpu_custom_call.1} parent=1 // pred_check
      _
    $region3: #{tpu_custom_call.1} parent=1 // pred_check_branch
      %25 = sbr.rel (0) target = $region5
    $region4: #{tpu_custom_call.1} parent=1 // pred_region
      _
    $region5: #{tpu_custom_call.1} parent=1 // pred_fallthru
      _
    // Predicated region
    $region6: #{tpu_custom_call.1} parent=1 // pred_check
      _
    $region7: #{tpu_custom_call.1} parent=1 // pred_check_branch
      %27 = sbr.rel (0) target = $region9
    $region8: #{tpu_custom_call.1} parent=1 // pred_region
      _
    $region9: #{tpu_custom_call.1} parent=1 // pred_fallthru
      _
    // Predicated region
    $region10: #{tpu_custom_call.1} parent=1 // pred_check
      _
    $region11: #{tpu_custom_call.1} parent=1 // pred_check_branch
      %29 = sbr.rel (0) target = $region13
    $region12: #{tpu_custom_call.1} parent=1 // pred_region
      %s31 = ssub.s32 512, 512
      %32 = vsyncadd [#allocation3], %s31
      %s33 = sshll.u32 [#allocation2], 4
      %s34 = int_to_ptr.vmem [resolvable:$true] %s33
      %39 = dma.hbm_to_vmem [thread:$0]  %s2, 512, %s34, [#allocation3], 128, 128, 8
    $region13: #{tpu_custom_call.1} parent=1 // pred_fallthru
      _
    // Predicated region
    $region14: #{tpu_custom_call.1} parent=1 // pred_check
      _
    $region15: #{tpu_custom_call.1} parent=1 // pred_check_branch
      %41 = sbr.rel (0) target = $region17
    $region16: #{tpu_custom_call.1} parent=1 // pred_region
      %s43 = ssub.s32 512, 512
      %44 = vsyncadd [#allocation6], %s43
      %s45 = sshll.u32 [#allocation5], 4
      %s46 = int_to_ptr.vmem [resolvable:$true] %s45
      %51 = dma.hbm_to_vmem [thread:$0]  %s3, 512, %s46, [#allocation6], 128, 128, 8
    $region17: #{tpu_custom_call.1} parent=1 // pred_fallthru
      _
    // Predicated region
    $region18: #{tpu_custom_call.1} parent=1 // pred_check
      _
    $region19: #{tpu_custom_call.1} parent=1 // pred_check_branch
      %53 = sbr.rel (0) target = $region21
    $region20: #{tpu_custom_call.1} parent=1 // pred_region
      _
    $region21: #{tpu_custom_call.1} parent=1 // pred_fallthru
      _
    // Predicated region
    $region22: #{tpu_custom_call.1} parent=1 // pred_check
      _
    $region23: #{tpu_custom_call.1} parent=1 // pred_check_branch
      %55 = sbr.rel (0) target = $region25
    $region24: #{tpu_custom_call.1} parent=1 // pred_region
      %s57 = ssub.s32 16, 16
      %58 = vsyncadd [#allocation6], %s57
      %s60 = sshll.u32 [#allocation7], 4
      %s61 = int_to_ptr.vmem [resolvable:$true] %s60
      %63 = dma.hbm_to_vmem [thread:$0]  %s5, 16, %s61, [#allocation6]
    $region25: #{tpu_custom_call.1} parent=1 // pred_fallthru
      _
    // Predicated region
    $region26: #{tpu_custom_call.1} parent=1 // pred_check
      _
    $region27: #{tpu_custom_call.1} parent=1 // pred_check_branch
      %65 = sbr.rel (0) target = $region29
    $region28: #{tpu_custom_call.1} parent=1 // pred_region
      _
    $region29: #{tpu_custom_call.1} parent=1 // pred_fallthru
      _
    // Predicated region
    $region30: #{tpu_custom_call.1} parent=1 // pred_check
      _
    $region31: #{tpu_custom_call.1} parent=1 // pred_check_branch
      %67 = sbr.rel (0) target = $region33
    $region32: #{tpu_custom_call.1} parent=1 // pred_region
      _
    $region33: #{tpu_custom_call.1} parent=1 // pred_fallthru
      _
    // Predicated region
    $region34: #{tpu_custom_call.1} parent=1 // pred_check
      _
    $region35: #{tpu_custom_call.1} parent=1 // pred_check_branch
      %69 = sbr.rel (0) target = $region37
    $region36: #{tpu_custom_call.1} parent=1 // pred_region
      %s71 = ssub.s32 512, 512
      %72 = vsyncadd [#allocation9], %s71
      %s73 = sshll.u32 [#allocation8], 4
      %s74 = int_to_ptr.vmem [resolvable:$true] %s73
      %79 = dma.hbm_to_vmem [thread:$0]  %s8, 512, %s74, [#allocation9], 128, 128, 8
    $region37: #{tpu_custom_call.1} parent=1 // pred_fallthru
      _
    // Predicated region
    $region38: #{tpu_custom_call.1} parent=1 // pred_check
      _
    $region39: #{tpu_custom_call.1} parent=1 // pred_check_branch
      %81 = sbr.rel (0) target = $region41
    $region40: #{tpu_custom_call.1} parent=1 // pred_region
      _
    $region41: #{tpu_custom_call.1} parent=1 // pred_fallthru
      _
    // Predicated region
    $region42: #{tpu_custom_call.1} parent=1 // pred_check
      _
    $region43: #{tpu_custom_call.1} parent=1 // pred_check_branch
      %83 = sbr.rel (0) target = $region45
    $region44: #{tpu_custom_call.1} parent=1 // pred_region
      %s85 = ssub.s32 512, 512
      %86 = vsyncadd [#allocation9], %s85
      %s87 = sshll.u32 [#allocation10], 4
      %s88 = int_to_ptr.vmem [resolvable:$true] %s87
      %93 = dma.hbm_to_vmem [thread:$0]  %s10, 512, %s88, [#allocation9], 128, 128, 8
    $region45: #{tpu_custom_call.1} parent=1 // pred_fallthru
      _
    // Predicated region
    $region46: #{tpu_custom_call.1} parent=1 // pred_check
      _
    $region47: #{tpu_custom_call.1} parent=1 // pred_check_branch
      %95 = sbr.rel (0) target = $region49
    $region48: #{tpu_custom_call.1} parent=1 // pred_region
      _
    $region49: #{tpu_custom_call.1} parent=1 // pred_fallthru
      _
    // Predicated region
    $region50: #{tpu_custom_call.1} parent=1 // pred_check
      _
    $region51: #{tpu_custom_call.1} parent=1 // pred_check_branch
      %97 = sbr.rel (0) target = $region53
    $region52: #{tpu_custom_call.1} parent=1 // pred_region
      %s99 = ssub.s32 512, 512
      %100 = vsyncadd [#allocation12], %s99
      %s101 = sshll.u32 [#allocation11], 4
      %s102 = int_to_ptr.vmem [resolvable:$true] %s101
      %107 = dma.hbm_to_vmem [thread:$0]  %s12, 512, %s102, [#allocation12], 128, 128, 8
    $region53: #{tpu_custom_call.1} parent=1 // pred_fallthru
      _
    // Predicated region
    $region54: #{tpu_custom_call.1} parent=1 // pred_check
      _
    $region55: #{tpu_custom_call.1} parent=1 // pred_check_branch
      %109 = sbr.rel (0) target = $region57
    $region56: #{tpu_custom_call.1} parent=1 // pred_region
      _
    $region57: #{tpu_custom_call.1} parent=1 // pred_fallthru
      _
    // Predicated region
    $region58: #{tpu_custom_call.1} parent=1 // pred_check
      _
    $region59: #{tpu_custom_call.1} parent=1 // pred_check_branch
      %111 = sbr.rel (0) target = $region61
    $region60: #{tpu_custom_call.1} parent=1 // pred_region
      %112 = dma.done [#allocation3], 512
    $region61: #{tpu_custom_call.1} parent=1 // pred_fallthru
      _
    // Predicated region
    $region62: #{tpu_custom_call.1} parent=1 // pred_check
      _
    $region63: #{tpu_custom_call.1} parent=1 // pred_check_branch
      %114 = sbr.rel (0) target = $region65
    $region64: #{tpu_custom_call.1} parent=1 // pred_region
      %115 = dma.done [#allocation6], 512
    $region65: #{tpu_custom_call.1} parent=1 // pred_fallthru
      _
    // Predicated region
    $region66: #{tpu_custom_call.1} parent=1 // pred_check
      _
    $region67: #{tpu_custom_call.1} parent=1 // pred_check_branch
      %117 = sbr.rel (0) target = $region69
    $region68: #{tpu_custom_call.1} parent=1 // pred_region
      %118 = dma.done [#allocation6], 16
    $region69: #{tpu_custom_call.1} parent=1 // pred_fallthru
      _
    // Predicated region
    $region70: #{tpu_custom_call.1} parent=1 // pred_check
      _
    $region71: #{tpu_custom_call.1} parent=1 // pred_check_branch
      %120 = sbr.rel (0) target = $region73
    $region72: #{tpu_custom_call.1} parent=1 // pred_region
      %121 = dma.done [#allocation9], 512
    $region73: #{tpu_custom_call.1} parent=1 // pred_fallthru
      _
    // Predicated region
    $region74: #{tpu_custom_call.1} parent=1 // pred_check
      _
    $region75: #{tpu_custom_call.1} parent=1 // pred_check_branch
      %123 = sbr.rel (0) target = $region77
    $region76: #{tpu_custom_call.1} parent=1 // pred_region
      %124 = dma.done [#allocation9], 512
    $region77: #{tpu_custom_call.1} parent=1 // pred_fallthru
      _
    // Predicated region
    $region78: #{tpu_custom_call.1} parent=1 // pred_check
      _
    $region79: #{tpu_custom_call.1} parent=1 // pred_check_branch
      %126 = sbr.rel (0) target = $region81
    $region80: #{tpu_custom_call.1} parent=1 // pred_region
      %127 = dma.done [#allocation12], 512
    $region81: #{tpu_custom_call.1} parent=1 // pred_fallthru
      _
    %v128 = vld [vmem:[%s0] sm:$0xf]
    %v129 = vld [vmem:[%s1] sm:$0xff]
    %v130 = vld [vmem:[%s1 + $0x8] sm:$0xff]
    %v131 = vld [vmem:[%s1 + $0x10] sm:$0xff]
    %v132 = vld [vmem:[%s1 + $0x18] sm:$0xff]
    %v133 = vld [vmem:[#allocation2] sm:$0xff]
    %v134 = vld [vmem:[#allocation2 + $0x8] sm:$0xff]
    %v135 = vld [vmem:[#allocation2 + $0x10] sm:$0xff]
    %v136 = vld [vmem:[#allocation2 + $0x18] sm:$0xff]
    %v137 = vld [vmem:[%s4] sm:$0x1]
    %v139 = vlaneseq
    %v140 = vshrl.u32 %v139, 7
    %v141 = vsub.s32 0, %v140
    %v142 = vrot.slane %v137, %v141
    %vm144 = vcmask 261120
    %v146 = vsel %vm144, %v128, 0
    %148 = vmatprep.subr.mxu0 0.0
    %149 = vmatpush1.msra.mxu0 0.0
    %150 = vmatprep.subr.mxu0 0.0
    %151 = vmatpush1.msra.mxu0 0.0
    %152 = vmatprep.subr.mxu0 0.0
    %153 = vmatpush1.msra.mxu0 0.0
    %154 = vmatprep.subr.mxu0 0.0
    %155 = vmatpush1.msra.mxu0 0.0
    %156 = vmatprep.subr.mxu0 0.0
    %157 = vmatpush1.msra.mxu0 0.0
    %158 = vmatprep.subr.mxu0 0.0
    %159 = vmatpush1.msra.mxu0 0.0
    %160 = vmatprep.subr.mxu0 0.0
    %161 = vmatpush1.msra.mxu0 0.0
    %162 = vmatprep.subr.mxu0 0.0
    %163 = vmatpush1.msra.mxu0 0.0
    %164 = vmatprep.subr.mxu0 0.0
    %165 = vmatpush1.msra.mxu0 0.0
    %166 = vmatprep.subr.mxu0 0.0
    %167 = vmatpush1.msra.mxu0 0.0
    %168 = vmatprep.subr.mxu0 0.0
    %169 = vmatpush1.msra.mxu0 0.0
    %170 = vmatprep.subr.mxu0 0.0
    %171 = vmatpush1.msra.mxu0 0.0
    %172 = vmatprep.subr.mxu0 0.0
    %173 = vmatpush1.msra.mxu0 %v136
    %174 = vmatprep.subr.mxu0 0.0
    %175 = vmatpush1.msra.mxu0 %v135
    %176 = vmatprep.subr.mxu0 0.0
    %177 = vmatpush1.msra.mxu0 %v134
    %178 = vmatprep.subr.mxu0 0.0
    %179 = vmatpush1.msra.mxu0 %v133
    %180 = vmatprep.subr.mxu0 0.0
    %181 = vmatpush2.msra.mxu0 0.0
    %182 = vmatprep.subr.mxu0 0.0
    %183 = vmatpush2.msra.mxu0 0.0
    %184 = vmatprep.subr.mxu0 0.0
    %185 = vmatpush2.msra.mxu0 0.0
    %186 = vmatprep.subr.mxu0 0.0
    %187 = vmatpush2.msra.mxu0 0.0
    %188 = vmatprep.subr.mxu0 0.0
    %189 = vmatpush2.msra.mxu0 0.0
    %190 = vmatprep.subr.mxu0 0.0
    %191 = vmatpush2.msra.mxu0 0.0
    %192 = vmatprep.subr.mxu0 0.0
    %193 = vmatpush2.msra.mxu0 0.0
    %194 = vmatprep.subr.mxu0 0.0
    %195 = vmatpush2.msra.mxu0 0.0
    %196 = vmatprep.subr.mxu0 0.0
    %197 = vmatpush2.msra.mxu0 0.0
    %198 = vmatprep.subr.mxu0 0.0
    %199 = vmatpush2.msra.mxu0 0.0
    %200 = vmatprep.subr.mxu0 0.0
    %201 = vmatpush2.msra.mxu0 0.0
    %202 = vmatprep.subr.mxu0 0.0
    %203 = vmatpush2.msra.mxu0 0.0
    %204 = vmatprep.subr.mxu0 0.0
    %205 = vmatpush2.msra.mxu0 0.0
    %206 = vmatprep.subr.mxu0 0.0
    %207 = vmatpush2.msra.mxu0 0.0
    %208 = vmatprep.subr.mxu0 0.0
    %209 = vmatpush2.msra.mxu0 0.0
    %210 = vmatprep.subr.mxu0 0.0
    %211 = vmatpush2.msra.mxu0 0.0
    %212 = vmatprep.mubr.f32.mxu0 0.0
    %213 = vmatmul.mubr.f32.gmra.mxu0 %v146
    %v214 = vpop.f32.mrf.mxu0
    %v215 = vadd.f32 %v142, %v214
    %v216 = vpop.f32.mrf.mxu0
    %217 = vdwg.mxu0
    %v218 = vld [vmem:[#allocation5] sm:$0xff]
    %v219 = vld [vmem:[#allocation5 + $0x8] sm:$0xff]
    %v220 = vld [vmem:[#allocation5 + $0x10] sm:$0xff]
    %v221 = vld [vmem:[#allocation5 + $0x18] sm:$0xff]
    %v222 = vld [vmem:[#allocation7] sm:$0x1]
    %v224 = vlaneseq
    %v225 = vshrl.u32 %v224, 7
    %v226 = vsub.s32 0, %v225
    %v227 = vrot.slane %v222, %v226
    %v230 = vsel %vm144, %v129, 0
    %v233 = vsel %vm144, %v130, 0
    %v236 = vsel %vm144, %v131, 0
    %v239 = vsel %vm144, %v132, 0
    %241 = vmatprep.subr.mxu0 0.0
    %242 = vmatpush1.msra.mxu0 0.0
    %243 = vmatprep.subr.mxu0 0.0
    %244 = vmatpush1.msra.mxu0 0.0
    %245 = vmatprep.subr.mxu0 0.0
    %246 = vmatpush1.msra.mxu0 0.0
    %247 = vmatprep.subr.mxu0 0.0
    %248 = vmatpush1.msra.mxu0 0.0
    %249 = vmatprep.subr.mxu0 0.0
    %250 = vmatpush1.msra.mxu0 0.0
    %251 = vmatprep.subr.mxu0 0.0
    %252 = vmatpush1.msra.mxu0 0.0
    %253 = vmatprep.subr.mxu0 0.0
    %254 = vmatpush1.msra.mxu0 0.0
    %255 = vmatprep.subr.mxu0 0.0
    %256 = vmatpush1.msra.mxu0 0.0
    %257 = vmatprep.subr.mxu0 0.0
    %258 = vmatpush1.msra.mxu0 0.0
    %259 = vmatprep.subr.mxu0 0.0
    %260 = vmatpush1.msra.mxu0 0.0
    %261 = vmatprep.subr.mxu0 0.0
    %262 = vmatpush1.msra.mxu0 0.0
    %263 = vmatprep.subr.mxu0 0.0
    %264 = vmatpush1.msra.mxu0 0.0
    %265 = vmatprep.subr.mxu0 0.0
    %266 = vmatpush1.msra.mxu0 %v221
    %267 = vmatprep.subr.mxu0 0.0
    %268 = vmatpush1.msra.mxu0 %v220
    %269 = vmatprep.subr.mxu0 0.0
    %270 = vmatpush1.msra.mxu0 %v219
    %271 = vmatprep.subr.mxu0 0.0
    %272 = vmatpush1.msra.mxu0 %v218
    %273 = vmatprep.subr.mxu0 0.0
    %274 = vmatpush2.msra.mxu0 0.0
    %275 = vmatprep.subr.mxu0 0.0
    %276 = vmatpush2.msra.mxu0 0.0
    %277 = vmatprep.subr.mxu0 0.0
    %278 = vmatpush2.msra.mxu0 0.0
    %279 = vmatprep.subr.mxu0 0.0
    %280 = vmatpush2.msra.mxu0 0.0
    %281 = vmatprep.subr.mxu0 0.0
    %282 = vmatpush2.msra.mxu0 0.0
    %283 = vmatprep.subr.mxu0 0.0
    %284 = vmatpush2.msra.mxu0 0.0
    %285 = vmatprep.subr.mxu0 0.0
    %286 = vmatpush2.msra.mxu0 0.0
    %287 = vmatprep.subr.mxu0 0.0
    %288 = vmatpush2.msra.mxu0 0.0
    %289 = vmatprep.subr.mxu0 0.0
    %290 = vmatpush2.msra.mxu0 0.0
    %291 = vmatprep.subr.mxu0 0.0
    %292 = vmatpush2.msra.mxu0 0.0
    %293 = vmatprep.subr.mxu0 0.0
    %294 = vmatpush2.msra.mxu0 0.0
    %295 = vmatprep.subr.mxu0 0.0
    %296 = vmatpush2.msra.mxu0 0.0
    %297 = vmatprep.subr.mxu0 0.0
    %298 = vmatpush2.msra.mxu0 0.0
    %299 = vmatprep.subr.mxu0 0.0
    %300 = vmatpush2.msra.mxu0 0.0
    %301 = vmatprep.subr.mxu0 0.0
    %302 = vmatpush2.msra.mxu0 0.0
    %303 = vmatprep.subr.mxu0 0.0
    %304 = vmatpush2.msra.mxu0 0.0
    %305 = vmatprep.mubr.f32.mxu0 0.0
    %306 = vmatmul.mubr.f32.gmra.mxu0 %v230
    %v307 = vpop.f32.mrf.mxu0
    %v308 = vadd.f32 %v227, %v307
    %v309 = vpop.f32.mrf.mxu0
    %310 = vmatprep.mubr.f32.mxu0 0.0
    %311 = vmatmul.mubr.f32.gmra.mxu0 %v233
    %v312 = vpop.f32.mrf.mxu0
    %v313 = vadd.f32 %v227, %v312
    %v314 = vpop.f32.mrf.mxu0
    %315 = vmatprep.mubr.f32.mxu0 0.0
    %316 = vmatmul.mubr.f32.gmra.mxu0 %v236
    %v317 = vpop.f32.mrf.mxu0
    %v318 = vadd.f32 %v227, %v317
    %v319 = vpop.f32.mrf.mxu0
    %320 = vmatprep.mubr.f32.mxu0 0.0
    %321 = vmatmul.mubr.f32.gmra.mxu0 %v239
    %v322 = vpop.f32.mrf.mxu0
    %v323 = vadd.f32 %v227, %v322
    %v324 = vpop.f32.mrf.mxu0
    %325 = vdwg.mxu0
    %v328 = vunpack.c.l.s4 1966171168
    %v329 = vunpack.c.0.s8 %v328
    %v330 = vlaneseq
    %v331 = vshrl.u32 %v330, 7
    %v332 = vsub.s32 %v329, %v331
    %v333 = vrot.slane %v215, %v332
    %v334 = vcombine.high %v333, %v333
    %v336 = vunpack.c.l.s4 1966171168
    %v337 = vunpack.c.0.s8 %v336
    %v338 = vlaneseq
    %v339 = vshrl.u32 %v338, 7
    %v340 = vsub.s32 %v337, %v339
    %v341 = vrot.slane %v333, %v340
    %v343 = vunpack.c.l.s4 1966171168
    %v344 = vunpack.c.0.s8 %v343
    %v345 = vlaneseq
    %v346 = vshrl.u32 %v345, 7
    %v347 = vsub.s32 %v344, %v346
    %v348 = vrot.slane %v334, %v347
    %v349 = vcombine.high %v341, %v341
    %v350 = vcombine.high %v348, %v348
    %v351 = vlaneseq
    %v352 = vshrl.u32 %v351, 7
    %v353 = vsub.s32 0, %v352
    %v354 = vrot.slane %v341, %v353
    %v355 = vlaneseq
    %v356 = vshrl.u32 %v355, 7
    %v357 = vsub.s32 0, %v356
    %v358 = vrot.slane %v348, %v357
    %v359 = vlaneseq
    %v360 = vshrl.u32 %v359, 7
    %v361 = vsub.s32 0, %v360
    %v362 = vrot.slane %v349, %v361
    %v363 = vlaneseq
    %v364 = vshrl.u32 %v363, 7
    %v365 = vsub.s32 0, %v364
    %v366 = vrot.slane %v350, %v365
    %v371 = vmul.f32 %v308, %v354
    %v372 = vmul.f32 %v313, %v358
    %v373 = vmul.f32 %v318, %v362
    %v374 = vmul.f32 %v323, %v366
    %v375 = vld [vmem:[%s6] sm:$0xff]
    %v376 = vld [vmem:[%s6 + $0x8] sm:$0xff]
    %v377 = vld [vmem:[%s6 + $0x10] sm:$0xff]
    %v378 = vld [vmem:[%s6 + $0x18] sm:$0xff]
    %v380 = vsel %vm144, %v371, 0
    %v383 = vsel %vm144, %v372, 0
    %v386 = vsel %vm144, %v373, 0
    %v389 = vsel %vm144, %v374, 0
    %391 = vmatprep.subr.mxu0 0.0
    %392 = vmatpush1.msra.mxu0 0.0
    %393 = vmatprep.subr.mxu0 0.0
    %394 = vmatpush1.msra.mxu0 0.0
    %395 = vmatprep.subr.mxu0 0.0
    %396 = vmatpush1.msra.mxu0 0.0
    %397 = vmatprep.subr.mxu0 0.0
    %398 = vmatpush1.msra.mxu0 0.0
    %399 = vmatprep.subr.mxu0 0.0
    %400 = vmatpush1.msra.mxu0 0.0
    %401 = vmatprep.subr.mxu0 0.0
    %402 = vmatpush1.msra.mxu0 0.0
    %403 = vmatprep.subr.mxu0 0.0
    %404 = vmatpush1.msra.mxu0 0.0
    %405 = vmatprep.subr.mxu0 0.0
    %406 = vmatpush1.msra.mxu0 0.0
    %407 = vmatprep.subr.mxu0 0.0
    %408 = vmatpush1.msra.mxu0 0.0
    %409 = vmatprep.subr.mxu0 0.0
    %410 = vmatpush1.msra.mxu0 0.0
    %411 = vmatprep.subr.mxu0 0.0
    %412 = vmatpush1.msra.mxu0 0.0
    %413 = vmatprep.subr.mxu0 0.0
    %414 = vmatpush1.msra.mxu0 0.0
    %415 = vmatprep.subr.mxu0 0.0
    %416 = vmatpush1.msra.mxu0 %v378
    %417 = vmatprep.subr.mxu0 0.0
    %418 = vmatpush1.msra.mxu0 %v377
    %419 = vmatprep.subr.mxu0 0.0
    %420 = vmatpush1.msra.mxu0 %v376
    %421 = vmatprep.subr.mxu0 0.0
    %422 = vmatpush1.msra.mxu0 %v375
    %423 = vmatprep.subr.mxu0 0.0
    %424 = vmatpush2.msra.mxu0 0.0
    %425 = vmatprep.subr.mxu0 0.0
    %426 = vmatpush2.msra.mxu0 0.0
    %427 = vmatprep.subr.mxu0 0.0
    %428 = vmatpush2.msra.mxu0 0.0
    %429 = vmatprep.subr.mxu0 0.0
    %430 = vmatpush2.msra.mxu0 0.0
    %431 = vmatprep.subr.mxu0 0.0
    %432 = vmatpush2.msra.mxu0 0.0
    %433 = vmatprep.subr.mxu0 0.0
    %434 = vmatpush2.msra.mxu0 0.0
    %435 = vmatprep.subr.mxu0 0.0
    %436 = vmatpush2.msra.mxu0 0.0
    %437 = vmatprep.subr.mxu0 0.0
    %438 = vmatpush2.msra.mxu0 0.0
    %439 = vmatprep.subr.mxu0 0.0
    %440 = vmatpush2.msra.mxu0 0.0
    %441 = vmatprep.subr.mxu0 0.0
    %442 = vmatpush2.msra.mxu0 0.0
    %443 = vmatprep.subr.mxu0 0.0
    %444 = vmatpush2.msra.mxu0 0.0
    %445 = vmatprep.subr.mxu0 0.0
    %446 = vmatpush2.msra.mxu0 0.0
    %447 = vmatprep.subr.mxu0 0.0
    %448 = vmatpush2.msra.mxu0 0.0
    %449 = vmatprep.subr.mxu0 0.0
    %450 = vmatpush2.msra.mxu0 0.0
    %451 = vmatprep.subr.mxu0 0.0
    %452 = vmatpush2.msra.mxu0 0.0
    %453 = vmatprep.subr.mxu0 0.0
    %454 = vmatpush2.msra.mxu0 0.0
    %455 = vmatprep.mubr.f32.mxu0 0.0
    %456 = vmatmul.mubr.f32.gmra.mxu0 %v380
    %v457 = vpop.f32.mrf.mxu0
    %v458 = vadd.f32 0.0, %v457
    %v459 = vpop.f32.mrf.mxu0
    %460 = vmatprep.mubr.f32.mxu0 0.0
    %461 = vmatmul.mubr.f32.gmra.mxu0 %v383
    %v462 = vpop.f32.mrf.mxu0
    %v463 = vadd.f32 0.0, %v462
    %v464 = vpop.f32.mrf.mxu0
    %465 = vmatprep.mubr.f32.mxu0 0.0
    %466 = vmatmul.mubr.f32.gmra.mxu0 %v386
    %v467 = vpop.f32.mrf.mxu0
    %v468 = vadd.f32 0.0, %v467
    %v469 = vpop.f32.mrf.mxu0
    %470 = vmatprep.mubr.f32.mxu0 0.0
    %471 = vmatmul.mubr.f32.gmra.mxu0 %v389
    %v472 = vpop.f32.mrf.mxu0
    %v473 = vadd.f32 0.0, %v472
    %v474 = vpop.f32.mrf.mxu0
    %475 = vdwg.mxu0
    %v476 = vmul.f32 %v458, 0.35355338
    %v477 = vmul.f32 %v463, 0.35355338
    %v478 = vmul.f32 %v468, 0.35355338
    %v479 = vmul.f32 %v473, 0.35355338
    %vm480 = vcmask 31744
    %v481 = vsel %vm480, %v476, -inf
    %v482 = vrot.slane %v481, 4
    %v483 = vmax.f32 %v481, %v482
    %v484 = vrot.slane %v483, 2
    %v485 = vmax.f32 %v483, %v484
    %v486 = vrot.slane %v485, 1
    %v487 = vmax.f32 %v485, %v486
    %v488 = vsel %vm480, %v477, -inf
    %v489 = vrot.slane %v488, 4
    %v490 = vmax.f32 %v488, %v489
    %v491 = vrot.slane %v490, 2
    %v492 = vmax.f32 %v490, %v491
    %v493 = vrot.slane %v492, 1
    %v494 = vmax.f32 %v492, %v493
    %v495 = vsel %vm480, %v478, -inf
    %v496 = vrot.slane %v495, 4
    %v497 = vmax.f32 %v495, %v496
    %v498 = vrot.slane %v497, 2
    %v499 = vmax.f32 %v497, %v498
    %v500 = vrot.slane %v499, 1
    %v501 = vmax.f32 %v499, %v500
    %v502 = vsel %vm480, %v479, -inf
    %v503 = vrot.slane %v502, 4
    %v504 = vmax.f32 %v502, %v503
    %v505 = vrot.slane %v504, 2
    %v506 = vmax.f32 %v504, %v505
    %v507 = vrot.slane %v506, 1
    %v508 = vmax.f32 %v506, %v507
    %v509 = vsub.f32 %v476, %v487
    %v510 = vsub.f32 %v477, %v494
    %v511 = vsub.f32 %v478, %v501
    %v512 = vsub.f32 %v479, %v508
    %v513 = vmul.f32 %v509, 1.442695
    %v514 = vpow.pop %v513
    %v515 = vmul.f32 %v510, 1.442695
    %v516 = vpow.pop %v515
    %v517 = vmul.f32 %v511, 1.442695
    %v518 = vpow.pop %v517
    %v519 = vmul.f32 %v512, 1.442695
    %v520 = vpow.pop %v519
    %v521 = vsel %vm480, %v514, 0.0
    %v522 = vrot.slane %v521, 4
    %v523 = vadd.f32 %v521, %v522
    %v524 = vrot.slane %v523, 2
    %v525 = vadd.f32 %v523, %v524
    %v526 = vrot.slane %v525, 1
    %v527 = vadd.f32 %v525, %v526
    %v528 = vsel %vm480, %v516, 0.0
    %v529 = vrot.slane %v528, 4
    %v530 = vadd.f32 %v528, %v529
    %v531 = vrot.slane %v530, 2
    %v532 = vadd.f32 %v530, %v531
    %v533 = vrot.slane %v532, 1
    %v534 = vadd.f32 %v532, %v533
    %v535 = vsel %vm480, %v518, 0.0
    %v536 = vrot.slane %v535, 4
    %v537 = vadd.f32 %v535, %v536
    %v538 = vrot.slane %v537, 2
    %v539 = vadd.f32 %v537, %v538
    %v540 = vrot.slane %v539, 1
    %v541 = vadd.f32 %v539, %v540
    %v542 = vsel %vm480, %v520, 0.0
    %v543 = vrot.slane %v542, 4
    %v544 = vadd.f32 %v542, %v543
    %v545 = vrot.slane %v544, 2
    %v546 = vadd.f32 %v544, %v545
    %v547 = vrot.slane %v546, 1
    %v548 = vadd.f32 %v546, %v547
    %v549 = vrcp.pop %v527
    %v550 = vrcp.pop %v534
    %v551 = vrcp.pop %v541
    %v552 = vrcp.pop %v548
    %v553 = vmul.f32 %v514, %v549
    %v554 = vmul.f32 %v516, %v550
    %v555 = vmul.f32 %v518, %v551
    %v556 = vmul.f32 %v520, %v552
    %v557 = vld [vmem:[%s7] sm:$0xf]
    %v559 = vsel %vm480, %v553, 0
    %v562 = vsel %vm480, %v554, 0
    %v565 = vsel %vm480, %v555, 0
    %v568 = vsel %vm480, %v556, 0
    %vm570 = vcmask 1043456
    %v572 = vsel %vm570, %v557, 0
    %574 = vmatprep.subr.mxu0 0.0
    %575 = vmatpush1.msra.mxu0 0.0
    %576 = vmatprep.subr.mxu0 0.0
    %577 = vmatpush1.msra.mxu0 0.0
    %578 = vmatprep.subr.mxu0 0.0
    %579 = vmatpush1.msra.mxu0 0.0
    %580 = vmatprep.subr.mxu0 0.0
    %581 = vmatpush1.msra.mxu0 0.0
    %582 = vmatprep.subr.mxu0 0.0
    %583 = vmatpush1.msra.mxu0 0.0
    %584 = vmatprep.subr.mxu0 0.0
    %585 = vmatpush1.msra.mxu0 0.0
    %586 = vmatprep.subr.mxu0 0.0
    %587 = vmatpush1.msra.mxu0 0.0
    %588 = vmatprep.subr.mxu0 0.0
    %589 = vmatpush1.msra.mxu0 0.0
    %590 = vmatprep.subr.mxu0 0.0
    %591 = vmatpush1.msra.mxu0 0.0
    %592 = vmatprep.subr.mxu0 0.0
    %593 = vmatpush1.msra.mxu0 0.0
    %594 = vmatprep.subr.mxu0 0.0
    %595 = vmatpush1.msra.mxu0 0.0
    %596 = vmatprep.subr.mxu0 0.0
    %597 = vmatpush1.msra.mxu0 0.0
    %598 = vmatprep.subr.mxu0 0.0
    %599 = vmatpush1.msra.mxu0 0.0
    %600 = vmatprep.subr.mxu0 0.0
    %601 = vmatpush1.msra.mxu0 0.0
    %602 = vmatprep.subr.mxu0 0.0
    %603 = vmatpush1.msra.mxu0 0.0
    %604 = vmatprep.subr.mxu0 0.0
    %605 = vmatpush1.msra.mxu0 %v572
    %606 = vmatprep.subr.mxu0 0.0
    %607 = vmatpush2.msra.mxu0 0.0
    %608 = vmatprep.subr.mxu0 0.0
    %609 = vmatpush2.msra.mxu0 0.0
    %610 = vmatprep.subr.mxu0 0.0
    %611 = vmatpush2.msra.mxu0 0.0
    %612 = vmatprep.subr.mxu0 0.0
    %613 = vmatpush2.msra.mxu0 0.0
    %614 = vmatprep.subr.mxu0 0.0
    %615 = vmatpush2.msra.mxu0 0.0
    %616 = vmatprep.subr.mxu0 0.0
    %617 = vmatpush2.msra.mxu0 0.0
    %618 = vmatprep.subr.mxu0 0.0
    %619 = vmatpush2.msra.mxu0 0.0
    %620 = vmatprep.subr.mxu0 0.0
    %621 = vmatpush2.msra.mxu0 0.0
    %622 = vmatprep.subr.mxu0 0.0
    %623 = vmatpush2.msra.mxu0 0.0
    %624 = vmatprep.subr.mxu0 0.0
    %625 = vmatpush2.msra.mxu0 0.0
    %626 = vmatprep.subr.mxu0 0.0
    %627 = vmatpush2.msra.mxu0 0.0
    %628 = vmatprep.subr.mxu0 0.0
    %629 = vmatpush2.msra.mxu0 0.0
    %630 = vmatprep.subr.mxu0 0.0
    %631 = vmatpush2.msra.mxu0 0.0
    %632 = vmatprep.subr.mxu0 0.0
    %633 = vmatpush2.msra.mxu0 0.0
    %634 = vmatprep.subr.mxu0 0.0
    %635 = vmatpush2.msra.mxu0 0.0
    %636 = vmatprep.subr.mxu0 0.0
    %637 = vmatpush2.msra.mxu0 0.0
    %638 = vmatprep.mubr.f32.mxu0 0.0
    %639 = vmatmul.mubr.f32.gmra.mxu0 %v559
    %v640 = vpop.f32.mrf.mxu0
    %v641 = vadd.f32 0.0, %v640
    %v642 = vpop.f32.mrf.mxu0
    %643 = vmatprep.mubr.f32.mxu0 0.0
    %644 = vmatmul.mubr.f32.gmra.mxu0 %v562
    %v645 = vpop.f32.mrf.mxu0
    %v646 = vadd.f32 0.0, %v645
    %v647 = vpop.f32.mrf.mxu0
    %648 = vmatprep.mubr.f32.mxu0 0.0
    %649 = vmatmul.mubr.f32.gmra.mxu0 %v565
    %v650 = vpop.f32.mrf.mxu0
    %v651 = vadd.f32 0.0, %v650
    %v652 = vpop.f32.mrf.mxu0
    %653 = vmatprep.mubr.f32.mxu0 0.0
    %654 = vmatmul.mubr.f32.gmra.mxu0 %v568
    %v655 = vpop.f32.mrf.mxu0
    %v656 = vadd.f32 0.0, %v655
    %v657 = vpop.f32.mrf.mxu0
    %658 = vdwg.mxu0
    %663 = vrot.lane.b32.xlu0 %v308, 96
    %v664 = vpop.permute.xlu0 %663
    %665 = vrot.lane.b32.xlu0 %v313, 96
    %v666 = vpop.permute.xlu0 %665
    %667 = vrot.lane.b32.xlu0 %v318, 96
    %v668 = vpop.permute.xlu0 %667
    %669 = vrot.lane.b32.xlu0 %v323, 96
    %v670 = vpop.permute.xlu0 %669
    %v675 = vmul.f32 %v641, %v664
    %v676 = vmul.f32 %v646, %v666
    %v677 = vmul.f32 %v651, %v668
    %v678 = vmul.f32 %v656, %v670
    %v679 = vsel %vm144, %v675, 0.0
    %v680 = vrot.slane %v679, 4
    %v681 = vadd.f32 %v679, %v680
    %v682 = vrot.slane %v681, 2
    %v683 = vadd.f32 %v681, %v682
    %v684 = vrot.slane %v683, 1
    %v685 = vadd.f32 %v683, %v684
    %v686 = vsel %vm144, %v676, 0.0
    %v687 = vrot.slane %v686, 4
    %v688 = vadd.f32 %v686, %v687
    %v689 = vrot.slane %v688, 2
    %v690 = vadd.f32 %v688, %v689
    %v691 = vrot.slane %v690, 1
    %v692 = vadd.f32 %v690, %v691
    %v693 = vsel %vm144, %v677, 0.0
    %v694 = vrot.slane %v693, 4
    %v695 = vadd.f32 %v693, %v694
    %v696 = vrot.slane %v695, 2
    %v697 = vadd.f32 %v695, %v696
    %v698 = vrot.slane %v697, 1
    %v699 = vadd.f32 %v697, %v698
    %v700 = vsel %vm144, %v678, 0.0
    %v701 = vrot.slane %v700, 4
    %v702 = vadd.f32 %v700, %v701
    %v703 = vrot.slane %v702, 2
    %v704 = vadd.f32 %v702, %v703
    %v705 = vrot.slane %v704, 1
    %v706 = vadd.f32 %v704, %v705
    %v707 = vld [vmem:[#allocation8] sm:$0xff]
    %v708 = vld [vmem:[#allocation8 + $0x8] sm:$0xff]
    %v709 = vld [vmem:[#allocation8 + $0x10] sm:$0xff]
    %v710 = vld [vmem:[#allocation8 + $0x18] sm:$0xff]
    %v711 = vld [vmem:[%s9] sm:$0x1]
    %v713 = vlaneseq
    %v714 = vshrl.u32 %v713, 7
    %v715 = vsub.s32 0, %v714
    %v716 = vrot.slane %v711, %v715
    %vm722 = vcmask 1041409
    %v723 = vsel %vm722, %v692, %v685
    %vm724 = vcmask 1042434
    %v725 = vsel %vm724, %v699, %v723
    %vm726 = vcmask 1043459
    %v727 = vsel %vm726, %v706, %v725
    %v728 = vsel %vm144, %v727, 0
    %730 = vmatprep.subr.mxu0 0.0
    %731 = vmatpush1.msra.mxu0 0.0
    %732 = vmatprep.subr.mxu0 0.0
    %733 = vmatpush1.msra.mxu0 0.0
    %734 = vmatprep.subr.mxu0 0.0
    %735 = vmatpush1.msra.mxu0 0.0
    %736 = vmatprep.subr.mxu0 0.0
    %737 = vmatpush1.msra.mxu0 0.0
    %738 = vmatprep.subr.mxu0 0.0
    %739 = vmatpush1.msra.mxu0 0.0
    %740 = vmatprep.subr.mxu0 0.0
    %741 = vmatpush1.msra.mxu0 0.0
    %742 = vmatprep.subr.mxu0 0.0
    %743 = vmatpush1.msra.mxu0 0.0
    %744 = vmatprep.subr.mxu0 0.0
    %745 = vmatpush1.msra.mxu0 0.0
    %746 = vmatprep.subr.mxu0 0.0
    %747 = vmatpush1.msra.mxu0 0.0
    %748 = vmatprep.subr.mxu0 0.0
    %749 = vmatpush1.msra.mxu0 0.0
    %750 = vmatprep.subr.mxu0 0.0
    %751 = vmatpush1.msra.mxu0 0.0
    %752 = vmatprep.subr.mxu0 0.0
    %753 = vmatpush1.msra.mxu0 0.0
    %754 = vmatprep.subr.mxu0 0.0
    %755 = vmatpush1.msra.mxu0 %v710
    %756 = vmatprep.subr.mxu0 0.0
    %757 = vmatpush1.msra.mxu0 %v709
    %758 = vmatprep.subr.mxu0 0.0
    %759 = vmatpush1.msra.mxu0 %v708
    %760 = vmatprep.subr.mxu0 0.0
    %761 = vmatpush1.msra.mxu0 %v707
    %762 = vmatprep.subr.mxu0 0.0
    %763 = vmatpush2.msra.mxu0 0.0
    %764 = vmatprep.subr.mxu0 0.0
    %765 = vmatpush2.msra.mxu0 0.0
    %766 = vmatprep.subr.mxu0 0.0
    %767 = vmatpush2.msra.mxu0 0.0
    %768 = vmatprep.subr.mxu0 0.0
    %769 = vmatpush2.msra.mxu0 0.0
    %770 = vmatprep.subr.mxu0 0.0
    %771 = vmatpush2.msra.mxu0 0.0
    %772 = vmatprep.subr.mxu0 0.0
    %773 = vmatpush2.msra.mxu0 0.0
    %774 = vmatprep.subr.mxu0 0.0
    %775 = vmatpush2.msra.mxu0 0.0
    %776 = vmatprep.subr.mxu0 0.0
    %777 = vmatpush2.msra.mxu0 0.0
    %778 = vmatprep.subr.mxu0 0.0
    %779 = vmatpush2.msra.mxu0 0.0
    %780 = vmatprep.subr.mxu0 0.0
    %781 = vmatpush2.msra.mxu0 0.0
    %782 = vmatprep.subr.mxu0 0.0
    %783 = vmatpush2.msra.mxu0 0.0
    %784 = vmatprep.subr.mxu0 0.0
    %785 = vmatpush2.msra.mxu0 0.0
    %786 = vmatprep.subr.mxu0 0.0
    %787 = vmatpush2.msra.mxu0 0.0
    %788 = vmatprep.subr.mxu0 0.0
    %789 = vmatpush2.msra.mxu0 0.0
    %790 = vmatprep.subr.mxu0 0.0
    %791 = vmatpush2.msra.mxu0 0.0
    %792 = vmatprep.subr.mxu0 0.0
    %793 = vmatpush2.msra.mxu0 0.0
    %794 = vmatprep.mubr.f32.mxu0 0.0
    %795 = vmatmul.mubr.f32.gmra.mxu0 %v728
    %v796 = vpop.f32.mrf.mxu0
    %v797 = vadd.f32 %v716, %v796
    %v798 = vpop.f32.mrf.mxu0
    %799 = vdwg.mxu0
    %v800 = vld [vmem:[#allocation10] sm:$0xff]
    %v801 = vld [vmem:[#allocation10 + $0x8] sm:$0xff]
    %v802 = vld [vmem:[#allocation10 + $0x10] sm:$0xff]
    %v803 = vld [vmem:[#allocation10 + $0x18] sm:$0xff]
    %v804 = vld [vmem:[%s11] sm:$0x1]
    %v806 = vlaneseq
    %v807 = vshrl.u32 %v806, 7
    %v808 = vsub.s32 0, %v807
    %v809 = vrot.slane %v804, %v808
    %v812 = vsel %vm144, %v797, 0
    %814 = vmatprep.subr.mxu0 0.0
    %815 = vmatpush1.msra.mxu0 0.0
    %816 = vmatprep.subr.mxu0 0.0
    %817 = vmatpush1.msra.mxu0 0.0
    %818 = vmatprep.subr.mxu0 0.0
    %819 = vmatpush1.msra.mxu0 0.0
    %820 = vmatprep.subr.mxu0 0.0
    %821 = vmatpush1.msra.mxu0 0.0
    %822 = vmatprep.subr.mxu0 0.0
    %823 = vmatpush1.msra.mxu0 0.0
    %824 = vmatprep.subr.mxu0 0.0
    %825 = vmatpush1.msra.mxu0 0.0
    %826 = vmatprep.subr.mxu0 0.0
    %827 = vmatpush1.msra.mxu0 0.0
    %828 = vmatprep.subr.mxu0 0.0
    %829 = vmatpush1.msra.mxu0 0.0
    %830 = vmatprep.subr.mxu0 0.0
    %831 = vmatpush1.msra.mxu0 0.0
    %832 = vmatprep.subr.mxu0 0.0
    %833 = vmatpush1.msra.mxu0 0.0
    %834 = vmatprep.subr.mxu0 0.0
    %835 = vmatpush1.msra.mxu0 0.0
    %836 = vmatprep.subr.mxu0 0.0
    %837 = vmatpush1.msra.mxu0 0.0
    %838 = vmatprep.subr.mxu0 0.0
    %839 = vmatpush1.msra.mxu0 %v803
    %840 = vmatprep.subr.mxu0 0.0
    %841 = vmatpush1.msra.mxu0 %v802
    %842 = vmatprep.subr.mxu0 0.0
    %843 = vmatpush1.msra.mxu0 %v801
    %844 = vmatprep.subr.mxu0 0.0
    %845 = vmatpush1.msra.mxu0 %v800
    %846 = vmatprep.subr.mxu0 0.0
    %847 = vmatpush2.msra.mxu0 0.0
    %848 = vmatprep.subr.mxu0 0.0
    %849 = vmatpush2.msra.mxu0 0.0
    %850 = vmatprep.subr.mxu0 0.0
    %851 = vmatpush2.msra.mxu0 0.0
    %852 = vmatprep.subr.mxu0 0.0
    %853 = vmatpush2.msra.mxu0 0.0
    %854 = vmatprep.subr.mxu0 0.0
    %855 = vmatpush2.msra.mxu0 0.0
    %856 = vmatprep.subr.mxu0 0.0
    %857 = vmatpush2.msra.mxu0 0.0
    %858 = vmatprep.subr.mxu0 0.0
    %859 = vmatpush2.msra.mxu0 0.0
    %860 = vmatprep.subr.mxu0 0.0
    %861 = vmatpush2.msra.mxu0 0.0
    %862 = vmatprep.subr.mxu0 0.0
    %863 = vmatpush2.msra.mxu0 0.0
    %864 = vmatprep.subr.mxu0 0.0
    %865 = vmatpush2.msra.mxu0 0.0
    %866 = vmatprep.subr.mxu0 0.0
    %867 = vmatpush2.msra.mxu0 0.0
    %868 = vmatprep.subr.mxu0 0.0
    %869 = vmatpush2.msra.mxu0 0.0
    %870 = vmatprep.subr.mxu0 0.0
    %871 = vmatpush2.msra.mxu0 0.0
    %872 = vmatprep.subr.mxu0 0.0
    %873 = vmatpush2.msra.mxu0 0.0
    %874 = vmatprep.subr.mxu0 0.0
    %875 = vmatpush2.msra.mxu0 0.0
    %876 = vmatprep.subr.mxu0 0.0
    %877 = vmatpush2.msra.mxu0 0.0
    %878 = vmatprep.mubr.f32.mxu0 0.0
    %879 = vmatmul.mubr.f32.gmra.mxu0 %v812
    %v880 = vpop.f32.mrf.mxu0
    %v881 = vadd.f32 %v809, %v880
    %v882 = vpop.f32.mrf.mxu0
    %883 = vdwg.mxu0
    %v884 = vmax.f32 %v881, 0.0
    %v885 = vld [vmem:[#allocation11] sm:$0xff]
    %v886 = vld [vmem:[#allocation11 + $0x8] sm:$0xff]
    %v887 = vld [vmem:[#allocation11 + $0x10] sm:$0xff]
    %v888 = vld [vmem:[#allocation11 + $0x18] sm:$0xff]
    %v889 = vld [vmem:[%s13] sm:$0x1]
    %v891 = vlaneseq
    %v892 = vshrl.u32 %v891, 7
    %v893 = vsub.s32 0, %v892
    %v894 = vrot.slane %v889, %v893
    %v897 = vsel %vm144, %v884, 0
    %899 = vmatprep.subr.mxu0 0.0
    %900 = vmatpush1.msra.mxu0 0.0
    %901 = vmatprep.subr.mxu0 0.0
    %902 = vmatpush1.msra.mxu0 0.0
    %903 = vmatprep.subr.mxu0 0.0
    %904 = vmatpush1.msra.mxu0 0.0
    %905 = vmatprep.subr.mxu0 0.0
    %906 = vmatpush1.msra.mxu0 0.0
    %907 = vmatprep.subr.mxu0 0.0
    %908 = vmatpush1.msra.mxu0 0.0
    %909 = vmatprep.subr.mxu0 0.0
    %910 = vmatpush1.msra.mxu0 0.0
    %911 = vmatprep.subr.mxu0 0.0
    %912 = vmatpush1.msra.mxu0 0.0
    %913 = vmatprep.subr.mxu0 0.0
    %914 = vmatpush1.msra.mxu0 0.0
    %915 = vmatprep.subr.mxu0 0.0
    %916 = vmatpush1.msra.mxu0 0.0
    %917 = vmatprep.subr.mxu0 0.0
    %918 = vmatpush1.msra.mxu0 0.0
    %919 = vmatprep.subr.mxu0 0.0
    %920 = vmatpush1.msra.mxu0 0.0
    %921 = vmatprep.subr.mxu0 0.0
    %922 = vmatpush1.msra.mxu0 0.0
    %923 = vmatprep.subr.mxu0 0.0
    %924 = vmatpush1.msra.mxu0 %v888
    %925 = vmatprep.subr.mxu0 0.0
    %926 = vmatpush1.msra.mxu0 %v887
    %927 = vmatprep.subr.mxu0 0.0
    %928 = vmatpush1.msra.mxu0 %v886
    %929 = vmatprep.subr.mxu0 0.0
    %930 = vmatpush1.msra.mxu0 %v885
    %931 = vmatprep.subr.mxu0 0.0
    %932 = vmatpush2.msra.mxu0 0.0
    %933 = vmatprep.subr.mxu0 0.0
    %934 = vmatpush2.msra.mxu0 0.0
    %935 = vmatprep.subr.mxu0 0.0
    %936 = vmatpush2.msra.mxu0 0.0
    %937 = vmatprep.subr.mxu0 0.0
    %938 = vmatpush2.msra.mxu0 0.0
    %939 = vmatprep.subr.mxu0 0.0
    %940 = vmatpush2.msra.mxu0 0.0
    %941 = vmatprep.subr.mxu0 0.0
    %942 = vmatpush2.msra.mxu0 0.0
    %943 = vmatprep.subr.mxu0 0.0
    %944 = vmatpush2.msra.mxu0 0.0
    %945 = vmatprep.subr.mxu0 0.0
    %946 = vmatpush2.msra.mxu0 0.0
    %947 = vmatprep.subr.mxu0 0.0
    %948 = vmatpush2.msra.mxu0 0.0
    %949 = vmatprep.subr.mxu0 0.0
    %950 = vmatpush2.msra.mxu0 0.0
    %951 = vmatprep.subr.mxu0 0.0
    %952 = vmatpush2.msra.mxu0 0.0
    %953 = vmatprep.subr.mxu0 0.0
    %954 = vmatpush2.msra.mxu0 0.0
    %955 = vmatprep.subr.mxu0 0.0
    %956 = vmatpush2.msra.mxu0 0.0
    %957 = vmatprep.subr.mxu0 0.0
    %958 = vmatpush2.msra.mxu0 0.0
    %959 = vmatprep.subr.mxu0 0.0
    %960 = vmatpush2.msra.mxu0 0.0
    %961 = vmatprep.subr.mxu0 0.0
    %962 = vmatpush2.msra.mxu0 0.0
    %963 = vmatprep.mubr.f32.mxu0 0.0
    %964 = vmatmul.mubr.f32.gmra.mxu0 %v897
    %v965 = vpop.f32.mrf.mxu0
    %v966 = vadd.f32 %v894, %v965
    %v967 = vpop.f32.mrf.mxu0
    %968 = vdwg.mxu0
    %v969 = vmul.f32 %v966, %v966
    %vm970 = vcmask 257024
    %v971 = vsel %vm970, %v969, 0.0
    %972 = vadd.xlane.f32.xlu0 %v971
    %v973 = vpop.xlane.xlu0 %972
    %v974 = vmax.f32 %v973, 1e-24
    %v975 = vrsqrt.pop %v974
    %v976 = vmul.f32 %v966, %v975
    %977 = vst.msk [vmem:[#allocation13] sm:$0xf] %vm970, %v976
    // Predicated region
    $region82: #{tpu_custom_call.1} parent=1 // pred_check
      _
    $region83: #{tpu_custom_call.1} parent=1 // pred_check_branch
      %979 = sbr.rel (0) target = $region85
    $region84: #{tpu_custom_call.1} parent=1 // pred_region
      %s981 = ssub.s32 64, 64
      %982 = vsyncadd [#allocation4], %s981
      %s984 = sshll.u32 [#allocation13], 4
      %s985 = int_to_ptr.vmem [resolvable:$true] %s984
      %987 = dma.vmem_to_hbm [thread:$0]  %s985, 64, %s14, [#allocation4]
    $region85: #{tpu_custom_call.1} parent=1 // pred_fallthru
      _
    // Predicated region
    $region86: #{tpu_custom_call.1} parent=1 // pred_check
      _
    $region87: #{tpu_custom_call.1} parent=1 // pred_check_branch
      %989 = sbr.rel (0) target = $region89
    $region88: #{tpu_custom_call.1} parent=1 // pred_region
      %990 = dma.done [#allocation4], 64
    $region89: #{tpu_custom_call.1} parent=1 // pred_fallthru
      _
    %991 = vsyncpa [#allocation3], 1
    %992 = vsyncpa [#allocation6], 1
    %993 = vsyncpa [#allocation9], 1
    %994 = vsyncpa [#allocation12], 1
    %995 = vsyncpa [#allocation4], 1

</llo_original>
